<compile_context>
chip_gen: v6e
topology: v6e:2x2x1
jax: 0.10.0
libtpu: 0.0.40
codegen_flags: <defaults>
</compile_context>

<pallas_src>
import jax
import jax.numpy as jnp
from jax.experimental import pallas as pl
from jax.experimental.pallas import tpu as pltpu

# ---- consts (AgeCGAN-style) ----
NUM_Z_CHANNELS = 50
NUM_ENCODER_CHANNELS = 64
BN_EPS = 1e-5

DIMS = (
    NUM_Z_CHANNELS,                 # 50
    NUM_ENCODER_CHANNELS,           # 64
    NUM_ENCODER_CHANNELS // 2,      # 32
    NUM_ENCODER_CHANNELS // 4,      # 16
)  # final Linear maps 16 -> 1

D1, D2, D3 = DIMS[1], DIMS[2], DIMS[3]

# ---- packed-slab layout ----
Z_PAD = 64                          # z padded 50 -> 64 (bf16-tile aligned)
W_SLAB_ROWS, W_SLAB_COLS = 64, 128  # single lane-dense bf16 weight slab
L1_C0, L1_C1 = 0, 64                # W1: rows 0:64 (50 real), lanes 0:64
L2_C0, L2_C1 = 64, 96               # W2: rows 0:64,           lanes 64:96
L3_C0, L3_C1 = 96, 112              # W3: rows 0:32,           lanes 96:112

V_SLAB_ROWS = 8                     # rows: g1, beta1, g2, beta2, g3, beta3, w4^T, b4
V_SLAB_COLS = 64                    # f32 (BN / epilogue math stays f32)


def discriminator_z_kernel(z_ref, w_ref, v_ref, out_ref):
    inv_b = 1.0 / z_ref.shape[0]  # static batch size

    def bn_relu(h, gamma, beta):
        # train-mode BN, centered two-pass variance (robust to |mu| >> sigma)
        mu = jnp.sum(h, axis=0, keepdims=True) * inv_b
        d = h - mu
        var = jnp.sum(d * d, axis=0, keepdims=True) * inv_b
        scale = gamma * jax.lax.rsqrt(var + BN_EPS)
        return jnp.maximum(d * scale + beta, 0.0)

    # layer 1: 64(padded from 50) -> 64   (Linear bias cancelled by BN mean sub)
    h = jnp.dot(z_ref[...], w_ref[0:Z_PAD, L1_C0:L1_C1],
                preferred_element_type=jnp.float32)
    h = bn_relu(h, v_ref[0:1, 0:D1], v_ref[1:2, 0:D1])
    # layer 2: 64 -> 32
    h = jnp.dot(h.astype(jnp.bfloat16), w_ref[0:D1, L2_C0:L2_C1],
                preferred_element_type=jnp.float32)
    h = bn_relu(h, v_ref[2:3, 0:D2], v_ref[3:4, 0:D2])
    # layer 3: 32 -> 16
    h = jnp.dot(h.astype(jnp.bfloat16), w_ref[0:D2, L3_C0:L3_C1],
                preferred_element_type=jnp.float32)
    h = bn_relu(h, v_ref[4:5, 0:D3], v_ref[5:6, 0:D3])
    # final 16 -> 1 as VPU multiply + lane reduce (keeps MXU off output path).
    # Output kept (B, 1); lane-dense output only matters at large batch tiles.
    out_ref[...] = (
        jnp.sum(h * v_ref[6:7, 0:D3], axis=1, keepdims=True) + v_ref[7:8, 0:1]
    )


@jax.jit
def discriminator_z(z, w_slab, v_slab):
    B = z.shape[0]
    # zero-pad the contraction dim (free: padded rows of W1 are zero) and cast
    # to bf16 for the MXU; the padding columns contribute exactly 0.
    z_pad = jnp.pad(z, ((0, 0), (0, Z_PAD - NUM_Z_CHANNELS))).astype(jnp.bfloat16)

    flops = 2 * B * (Z_PAD * D1 + D1 * D2 + D2 * D3 + D3 * 1)
    bytes_accessed = (
        z_pad.size * 2 + w_slab.size * 2 + v_slab.size * 4 + B * 1 * 4
    )
    vmem_spec = pl.BlockSpec(memory_space=pltpu.MemorySpace.VMEM)
    return pl.pallas_call(
        discriminator_z_kernel,
        out_shape=jax.ShapeDtypeStruct((B, 1), jnp.float32),
        in_specs=[vmem_spec, vmem_spec, vmem_spec],
        out_specs=vmem_spec,
        cost_estimate=pl.CostEstimate(
            flops=flops,
            transcendentals=3 * (D1 + D2 + D3),   # rsqrt per BN feature
            bytes_accessed=bytes_accessed,
        ),
    )(z_pad, w_slab, v_slab)


def make_params(key):
    """Deterministic synthetic init (PyTorch-Linear-style uniform fan-in).

    Returns the *unpacked* PyTorch-equivalent params (incl. pre-BN biases,
    which the kernel drops) for the pure-JAX reference.
    Weights are pre-transposed to (in_dim, out_dim).
    """
    params = []
    layer_dims = list(zip(DIMS[:-1], DIMS[1:])) + [(DIMS[-1], 1)]
    keys = jax.random.split(key, len(layer_dims) * 2)
    for i, (in_dim, out_dim) in enumerate(layer_dims):
        bound = 1.0 / jnp.sqrt(float(in_dim))
        w = jax.random.uniform(
            keys[2 * i], (in_dim, out_dim), jnp.float32, -bound, bound
        )
        b = jax.random.uniform(
            keys[2 * i + 1], (1, out_dim), jnp.float32, -bound, bound
        )
        if i < len(layer_dims) - 1:  # BN affine params (gamma=1, beta=0 init)
            g = jnp.ones((1, out_dim), jnp.float32)
            beta = jnp.zeros((1, out_dim), jnp.float32)
            params += [w, b, g, beta]
        else:
            params += [w, b]
    return params


def pack_params(params):
    """Pack all kernel-needed params into two contiguous slabs (done once).

    Weight slab: lane-dense (64, 128) bf16.  Vector slab: (8, 64) f32.
    """
    (w1, _b1, g1, be1,
     w2, _b2, g2, be2,
     w3, _b3, g3, be3,
     w4, b4) = params

    w_slab = jnp.zeros((W_SLAB_ROWS, W_SLAB_COLS), jnp.float32)
    w_slab = w_slab.at[0:NUM_Z_CHANNELS, L1_C0:L1_C1].set(w1)   # (50, 64)
    w_slab = w_slab.at[0:D1, L2_C0:L2_C1].set(w2)               # (64, 32)
    w_slab = w_slab.at[0:D2, L3_C0:L3_C1].set(w3)               # (32, 16)
    w_slab = w_slab.astype(jnp.bfloat16)

    v_slab = jnp.zeros((V_SLAB_ROWS, V_SLAB_COLS), jnp.float32)
    v_slab = v_slab.at[0, 0:D1].set(g1[0])
    v_slab = v_slab.at[1, 0:D1].set(be1[0])
    v_slab = v_slab.at[2, 0:D2].set(g2[0])
    v_slab = v_slab.at[3, 0:D2].set(be2[0])
    v_slab = v_slab.at[4, 0:D3].set(g3[0])
    v_slab = v_slab.at[5, 0:D3].set(be3[0])
    v_slab = v_slab.at[6, 0:D3].set(w4[:, 0])
    v_slab = v_slab.at[7, 0:1].set(b4[0])
    return w_slab, v_slab


def reference_forward(z, params):
    """Pure-JAX f32 reference of the PyTorch forward (train-mode BN, with biases)."""
    out = z
    for i in range(3):
        w, b, g, beta = params[4 * i : 4 * i + 4]
        h = out @ w + b
        mu = jnp.mean(h, axis=0, keepdims=True)
        var = jnp.mean((h - mu) ** 2, axis=0, keepdims=True)
        out = jnp.maximum((h - mu) / jnp.sqrt(var + BN_EPS) * g + beta, 0.0)
    w4, b4 = params[-2:]
    return out @ w4 + b4


if __name__ == "__main__":
    key = jax.random.PRNGKey(0)
    k_z, k_p = jax.random.split(key)

    B = 8  # batch size (small)
    z = jax.random.normal(k_z, (B, NUM_Z_CHANNELS), jnp.float32)
    params = make_params(k_p)
    w_slab, v_slab = pack_params(params)

    out = discriminator_z(z, w_slab, v_slab)
    out = jax.block_until_ready(out)

    ref = reference_forward(z, params)
    assert out.shape == (B, 1)
    # tolerance loosened vs. the f32 reference because the MXU inputs are bf16
    assert jnp.allclose(out, ref, atol=5e-2, rtol=5e-2), "mismatch vs reference"

    print("KERNEL_OK")
</pallas_src>

<mosaic_0001>
module attributes {stable_mosaic.version = 11 : i64} {
  func.func @discriminator_z_kernel(%arg0: memref<8x64xbf16, #tpu.memory_space<vmem>>, %arg1: memref<64x128xbf16, #tpu.memory_space<vmem>>, %arg2: memref<8x64xf32, #tpu.memory_space<vmem>>, %arg3: memref<8x1xf32, #tpu.memory_space<vmem>>) attributes {dimension_semantics = [], scalar_prefetch = 0 : i64, scratch_operands = 0 : i64, tpu.core_type = #tpu.core_type<tc>} {
    %c0 = arith.constant 0 : index
    %c0_0 = arith.constant 0 : index
    %0 = vector.load %arg0[%c0, %c0_0] : memref<8x64xbf16, #tpu.memory_space<vmem>>, vector<8x64xbf16>
    %c0_1 = arith.constant 0 : index
    %c0_2 = arith.constant 0 : index
    %1 = vector.load %arg1[%c0_1, %c0_2] : memref<64x128xbf16, #tpu.memory_space<vmem>>, vector<64x64xbf16>
    %cst = arith.constant dense<0.000000e+00> : vector<8x64xf32>
    %2 = tpu.matmul %0, %1, %cst {dimension_numbers = #tpu.dot_dimension_numbers<[1], [0], [0], [1], [0, 0, 1, 1], [], []>} : vector<8x64xbf16>, vector<64x64xbf16>, vector<8x64xf32> -> vector<8x64xf32>
    %c0_3 = arith.constant 0 : index
    %c0_4 = arith.constant 0 : index
    %3 = vector.load %arg2[%c0_3, %c0_4] : memref<8x64xf32, #tpu.memory_space<vmem>>, vector<1x64xf32>
    %c1 = arith.constant 1 : index
    %c0_5 = arith.constant 0 : index
    %4 = vector.load %arg2[%c1, %c0_5] : memref<8x64xf32, #tpu.memory_space<vmem>>, vector<1x64xf32>
    %cst_6 = arith.constant dense<0.000000e+00> : vector<64xf32>
    %5 = vector.multi_reduction <add>, %2, %cst_6 [0] : vector<8x64xf32> to vector<64xf32>
    %6 = vector.shape_cast %5 : vector<64xf32> to vector<1x64xf32>
    %cst_7 = arith.constant 1.250000e-01 : f32
    %7 = vector.broadcast %cst_7 : f32 to vector<1x64xf32>
    %8 = arith.mulf %6, %7 : vector<1x64xf32>
    %9 = vector.broadcast %8 : vector<1x64xf32> to vector<8x64xf32>
    %10 = arith.subf %2, %9 : vector<8x64xf32>
    %11 = arith.mulf %10, %10 : vector<8x64xf32>
    %cst_8 = arith.constant dense<0.000000e+00> : vector<64xf32>
    %12 = vector.multi_reduction <add>, %11, %cst_8 [0] : vector<8x64xf32> to vector<64xf32>
    %13 = vector.shape_cast %12 : vector<64xf32> to vector<1x64xf32>
    %cst_9 = arith.constant 1.250000e-01 : f32
    %14 = vector.broadcast %cst_9 : f32 to vector<1x64xf32>
    %15 = arith.mulf %13, %14 : vector<1x64xf32>
    %cst_10 = arith.constant 9.99999974E-6 : f32
    %16 = vector.broadcast %cst_10 : f32 to vector<1x64xf32>
    %17 = arith.addf %15, %16 : vector<1x64xf32>
    %18 = math.rsqrt %17 : vector<1x64xf32>
    %19 = arith.mulf %3, %18 : vector<1x64xf32>
    %20 = vector.broadcast %19 : vector<1x64xf32> to vector<8x64xf32>
    %21 = arith.mulf %10, %20 : vector<8x64xf32>
    %22 = vector.broadcast %4 : vector<1x64xf32> to vector<8x64xf32>
    %23 = arith.addf %21, %22 : vector<8x64xf32>
    %cst_11 = arith.constant 0.000000e+00 : f32
    %24 = vector.broadcast %cst_11 : f32 to vector<8x64xf32>
    %25 = arith.maximumf %23, %24 : vector<8x64xf32>
    %26 = arith.truncf %25 : vector<8x64xf32> to vector<8x64xbf16>
    %c0_12 = arith.constant 0 : index
    %c64 = arith.constant 64 : index
    %27 = vector.load %arg1[%c0_12, %c64] : memref<64x128xbf16, #tpu.memory_space<vmem>>, vector<64x32xbf16>
    %cst_13 = arith.constant dense<0.000000e+00> : vector<8x32xf32>
    %28 = tpu.matmul %26, %27, %cst_13 {dimension_numbers = #tpu.dot_dimension_numbers<[1], [0], [0], [1], [0, 0, 1, 1], [], []>} : vector<8x64xbf16>, vector<64x32xbf16>, vector<8x32xf32> -> vector<8x32xf32>
    %c2 = arith.constant 2 : index
    %c0_14 = arith.constant 0 : index
    %29 = vector.load %arg2[%c2, %c0_14] : memref<8x64xf32, #tpu.memory_space<vmem>>, vector<1x32xf32>
    %c3 = arith.constant 3 : index
    %c0_15 = arith.constant 0 : index
    %30 = vector.load %arg2[%c3, %c0_15] : memref<8x64xf32, #tpu.memory_space<vmem>>, vector<1x32xf32>
    %cst_16 = arith.constant dense<0.000000e+00> : vector<32xf32>
    %31 = vector.multi_reduction <add>, %28, %cst_16 [0] : vector<8x32xf32> to vector<32xf32>
    %32 = vector.shape_cast %31 : vector<32xf32> to vector<1x32xf32>
    %cst_17 = arith.constant 1.250000e-01 : f32
    %33 = vector.broadcast %cst_17 : f32 to vector<1x32xf32>
    %34 = arith.mulf %32, %33 : vector<1x32xf32>
    %35 = vector.broadcast %34 : vector<1x32xf32> to vector<8x32xf32>
    %36 = arith.subf %28, %35 : vector<8x32xf32>
    %37 = arith.mulf %36, %36 : vector<8x32xf32>
    %cst_18 = arith.constant dense<0.000000e+00> : vector<32xf32>
    %38 = vector.multi_reduction <add>, %37, %cst_18 [0] : vector<8x32xf32> to vector<32xf32>
    %39 = vector.shape_cast %38 : vector<32xf32> to vector<1x32xf32>
    %cst_19 = arith.constant 1.250000e-01 : f32
    %40 = vector.broadcast %cst_19 : f32 to vector<1x32xf32>
    %41 = arith.mulf %39, %40 : vector<1x32xf32>
    %cst_20 = arith.constant 9.99999974E-6 : f32
    %42 = vector.broadcast %cst_20 : f32 to vector<1x32xf32>
    %43 = arith.addf %41, %42 : vector<1x32xf32>
    %44 = math.rsqrt %43 : vector<1x32xf32>
    %45 = arith.mulf %29, %44 : vector<1x32xf32>
    %46 = vector.broadcast %45 : vector<1x32xf32> to vector<8x32xf32>
    %47 = arith.mulf %36, %46 : vector<8x32xf32>
    %48 = vector.broadcast %30 : vector<1x32xf32> to vector<8x32xf32>
    %49 = arith.addf %47, %48 : vector<8x32xf32>
    %cst_21 = arith.constant 0.000000e+00 : f32
    %50 = vector.broadcast %cst_21 : f32 to vector<8x32xf32>
    %51 = arith.maximumf %49, %50 : vector<8x32xf32>
    %52 = arith.truncf %51 : vector<8x32xf32> to vector<8x32xbf16>
    %c0_22 = arith.constant 0 : index
    %c96 = arith.constant 96 : index
    %53 = vector.load %arg1[%c0_22, %c96] : memref<64x128xbf16, #tpu.memory_space<vmem>>, vector<32x16xbf16>
    %cst_23 = arith.constant dense<0.000000e+00> : vector<8x16xf32>
    %54 = tpu.matmul %52, %53, %cst_23 {dimension_numbers = #tpu.dot_dimension_numbers<[1], [0], [0], [1], [0, 0, 1, 1], [], []>} : vector<8x32xbf16>, vector<32x16xbf16>, vector<8x16xf32> -> vector<8x16xf32>
    %c4 = arith.constant 4 : index
    %c0_24 = arith.constant 0 : index
    %55 = vector.load %arg2[%c4, %c0_24] : memref<8x64xf32, #tpu.memory_space<vmem>>, vector<1x16xf32>
    %c5 = arith.constant 5 : index
    %c0_25 = arith.constant 0 : index
    %56 = vector.load %arg2[%c5, %c0_25] : memref<8x64xf32, #tpu.memory_space<vmem>>, vector<1x16xf32>
    %cst_26 = arith.constant dense<0.000000e+00> : vector<16xf32>
    %57 = vector.multi_reduction <add>, %54, %cst_26 [0] : vector<8x16xf32> to vector<16xf32>
    %58 = vector.shape_cast %57 : vector<16xf32> to vector<1x16xf32>
    %cst_27 = arith.constant 1.250000e-01 : f32
    %59 = vector.broadcast %cst_27 : f32 to vector<1x16xf32>
    %60 = arith.mulf %58, %59 : vector<1x16xf32>
    %61 = vector.broadcast %60 : vector<1x16xf32> to vector<8x16xf32>
    %62 = arith.subf %54, %61 : vector<8x16xf32>
    %63 = arith.mulf %62, %62 : vector<8x16xf32>
    %cst_28 = arith.constant dense<0.000000e+00> : vector<16xf32>
    %64 = vector.multi_reduction <add>, %63, %cst_28 [0] : vector<8x16xf32> to vector<16xf32>
    %65 = vector.shape_cast %64 : vector<16xf32> to vector<1x16xf32>
    %cst_29 = arith.constant 1.250000e-01 : f32
    %66 = vector.broadcast %cst_29 : f32 to vector<1x16xf32>
    %67 = arith.mulf %65, %66 : vector<1x16xf32>
    %cst_30 = arith.constant 9.99999974E-6 : f32
    %68 = vector.broadcast %cst_30 : f32 to vector<1x16xf32>
    %69 = arith.addf %67, %68 : vector<1x16xf32>
    %70 = math.rsqrt %69 : vector<1x16xf32>
    %71 = arith.mulf %55, %70 : vector<1x16xf32>
    %72 = vector.broadcast %71 : vector<1x16xf32> to vector<8x16xf32>
    %73 = arith.mulf %62, %72 : vector<8x16xf32>
    %74 = vector.broadcast %56 : vector<1x16xf32> to vector<8x16xf32>
    %75 = arith.addf %73, %74 : vector<8x16xf32>
    %cst_31 = arith.constant 0.000000e+00 : f32
    %76 = vector.broadcast %cst_31 : f32 to vector<8x16xf32>
    %77 = arith.maximumf %75, %76 : vector<8x16xf32>
    %c6 = arith.constant 6 : index
    %c0_32 = arith.constant 0 : index
    %78 = vector.load %arg2[%c6, %c0_32] : memref<8x64xf32, #tpu.memory_space<vmem>>, vector<1x16xf32>
    %79 = vector.broadcast %78 : vector<1x16xf32> to vector<8x16xf32>
    %80 = arith.mulf %77, %79 : vector<8x16xf32>
    %cst_33 = arith.constant dense<0.000000e+00> : vector<8xf32>
    %81 = vector.multi_reduction <add>, %80, %cst_33 [1] : vector<8x16xf32> to vector<8xf32>
    %82 = vector.shape_cast %81 : vector<8xf32> to vector<8x1xf32>
    %c7 = arith.constant 7 : index
    %c0_34 = arith.constant 0 : index
    %83 = vector.load %arg2[%c7, %c0_34] : memref<8x64xf32, #tpu.memory_space<vmem>>, vector<1x1xf32>
    %84 = vector.broadcast %83 : vector<1x1xf32> to vector<8x1xf32>
    %85 = arith.addf %82, %84 : vector<8x1xf32>
    %c0_35 = arith.constant 0 : index
    %c0_36 = arith.constant 0 : index
    %86 = vector.load %arg3[%c0_35, %c0_36] : memref<8x1xf32, #tpu.memory_space<vmem>>, vector<8x1xf32>
    tpu.vector_store %arg3[%c0_35, %c0_36], %85 {strides = array<i32>} : memref<8x1xf32, #tpu.memory_space<vmem>>, vector<8x1xf32>,
    return
  }
}

</mosaic_0001>

<llo_original>
// kernel: discriminator_z.1
$region0: #{discriminator_z.1}
  #allocation0 [shape = 'u32[]', space=smem, size = 0x4, offset = 0x4, fixed_abs, tag = 'smem constant byte address 0x4 - core index']
  #allocation1 [shape = 'u32[144,128]{1,0:T(1,128)}', space=vmem, size = 0x12000, scoped, tag = 'internal scratch']
  %s0 = inlined_call_operand.vmem [shape: bf16[8,64], index: 0, kind: input, shape index: {}]
  %s1 = inlined_call_operand.hbm [shape: bf16[64,128], index: 1, kind: input, shape index: {}]
  %s2 = inlined_call_operand.vmem [shape: f32[8,64], index: 2, kind: input, shape index: {}]
  %s3 = inlined_call_operand.vmem [shape: f32[8,1], index: 3, kind: output, shape index: {}]
  %s4 = sld [smem:[#allocation0]]
  $region26: #{discriminator_z.1} parent=0
    _
  %s6 = ssub.s32 1, %s4
  %s7 = scalar_select 0, %s6, %s4
  $region1: #{discriminator_z.1} parent=0
    #allocation2 [shape = 'u8[16384]{0}', space=vmem, size = 0x4000, scoped, tag = 'input window, operand 1, single buffered']
    #allocation3 [shape = 's32[1]{0}', space=sflag, size = 0x4, scoped, tag = 'scoped memory for discriminator_z.1']
    %8 = vsyncpa [#allocation3], 0
    // Predicated region
    $region2: #{discriminator_z.1} parent=1 // pred_check
      _
    $region3: #{discriminator_z.1} parent=1 // pred_check_branch
      %10 = sbr.rel (0) target = $region5
    $region4: #{discriminator_z.1} parent=1 // pred_region
      _
    $region5: #{discriminator_z.1} parent=1 // pred_fallthru
      _
    // Predicated region
    $region6: #{discriminator_z.1} parent=1 // pred_check
      _
    $region7: #{discriminator_z.1} parent=1 // pred_check_branch
      %12 = sbr.rel (0) target = $region9
    $region8: #{discriminator_z.1} parent=1 // pred_region
      %s14 = ssub.s32 512, 512
      %15 = vsyncadd [#allocation3], %s14
      %s16 = sshll.u32 [#allocation2], 4
      %s17 = int_to_ptr.vmem [resolvable:$true] %s16
      %22 = dma.hbm_to_vmem [thread:$0]  %s1, 512, %s17, [#allocation3], 64, 64, 4
    $region9: #{discriminator_z.1} parent=1 // pred_fallthru
      _
    // Predicated region
    $region10: #{discriminator_z.1} parent=1 // pred_check
      _
    $region11: #{discriminator_z.1} parent=1 // pred_check_branch
      %24 = sbr.rel (0) target = $region13
    $region12: #{discriminator_z.1} parent=1 // pred_region
      _
    $region13: #{discriminator_z.1} parent=1 // pred_fallthru
      _
    // Predicated region
    $region14: #{discriminator_z.1} parent=1 // pred_check
      _
    $region15: #{discriminator_z.1} parent=1 // pred_check_branch
      %26 = sbr.rel (0) target = $region17
    $region16: #{discriminator_z.1} parent=1 // pred_region
      %27 = dma.done [#allocation3], 512
    $region17: #{discriminator_z.1} parent=1 // pred_fallthru
      _
    %v29 = vld [vmem:[%s0] sm:$0xf]
    %v30 = vld [vmem:[#allocation2] sm:$0xf]
    %v31 = vld [vmem:[#allocation2 + $0x4] sm:$0xf]
    %v32 = vld [vmem:[#allocation2 + $0x8] sm:$0xf]
    %v33 = vld [vmem:[#allocation2 + $0xc] sm:$0xf]
    %v34 = vld [vmem:[#allocation2 + $0x10] sm:$0xf]
    %v35 = vld [vmem:[#allocation2 + $0x14] sm:$0xf]
    %v36 = vld [vmem:[#allocation2 + $0x18] sm:$0xf]
    %v37 = vld [vmem:[#allocation2 + $0x1c] sm:$0xf]
    %v46 = vunpack.c.l.b16 %v30
    %v47 = vunpack.c.l.b16 %v31
    %v48 = vunpack.c.l.b16 %v32
    %v49 = vunpack.c.l.b16 %v33
    %v50 = vunpack.c.l.b16 %v34
    %v51 = vunpack.c.l.b16 %v35
    %v52 = vunpack.c.l.b16 %v36
    %v53 = vunpack.c.l.b16 %v37
    %v54 = vpack.c.b16 %v47, %v46
    %v55 = vpack.c.b16 %v49, %v48
    %v56 = vpack.c.b16 %v51, %v50
    %v57 = vpack.c.b16 %v53, %v52
    %vm62 = vcmask 523264
    %v64 = vsel %vm62, %v29, 0
    %66 = vmatprep.subr.bf16.mxu0 0
    %67 = vmatpush1.bf16.msra.mxu0 0
    %68 = vmatprep.subr.bf16.mxu0 0
    %69 = vmatpush1.bf16.msra.mxu0 0
    %70 = vmatprep.subr.bf16.mxu0 0
    %71 = vmatpush1.bf16.msra.mxu0 0
    %72 = vmatprep.subr.bf16.mxu0 0
    %73 = vmatpush1.bf16.msra.mxu0 0
    %74 = vmatprep.subr.bf16.mxu0 0
    %75 = vmatpush1.bf16.msra.mxu0 %v57
    %76 = vmatprep.subr.bf16.mxu0 0
    %77 = vmatpush1.bf16.msra.mxu0 %v56
    %78 = vmatprep.subr.bf16.mxu0 0
    %79 = vmatpush1.bf16.msra.mxu0 %v55
    %80 = vmatprep.subr.bf16.mxu0 0
    %81 = vmatpush1.bf16.msra.mxu0 %v54
    %82 = vmatprep.subr.bf16.mxu0 0
    %83 = vmatpush2.bf16.msra.mxu0 0
    %84 = vmatprep.subr.bf16.mxu0 0
    %85 = vmatpush2.bf16.msra.mxu0 0
    %86 = vmatprep.subr.bf16.mxu0 0
    %87 = vmatpush2.bf16.msra.mxu0 0
    %88 = vmatprep.subr.bf16.mxu0 0
    %89 = vmatpush2.bf16.msra.mxu0 0
    %90 = vmatprep.subr.bf16.mxu0 0
    %91 = vmatpush2.bf16.msra.mxu0 0
    %92 = vmatprep.subr.bf16.mxu0 0
    %93 = vmatpush2.bf16.msra.mxu0 0
    %94 = vmatprep.subr.bf16.mxu0 0
    %95 = vmatpush2.bf16.msra.mxu0 0
    %96 = vmatprep.subr.bf16.mxu0 0
    %97 = vmatpush2.bf16.msra.mxu0 0
    %98 = vmatprep.mubr.bf16.mxu0 0
    %99 = vmatmul.mubr.bf16.gmra.mxu0 %v64
    %v100 = vpop.f32.mrf.mxu0
    %v101 = vadd.f32 0.0, %v100
    %v102 = vpop.f32.mrf.mxu0
    %v103 = vpop.f32.mrf.mxu0
    %v104 = vpop.f32.mrf.mxu0
    %105 = vdwg.mxu0
    %v106 = vld [vmem:[%s2] sm:$0x1]
    %v107 = vld [vmem:[%s2 + $0x1] sm:$0x1]
    %v108 = vsel %vm62, %v101, 0.0
    %v109 = vrot.slane %v108, 4
    %v110 = vadd.f32 %v108, %v109
    %v111 = vrot.slane %v110, 2
    %v112 = vadd.f32 %v110, %v111
    %v113 = vrot.slane %v112, 1
    %v114 = vadd.f32 %v112, %v113
    %v115 = vmul.f32 %v114, 0.125
    %v116 = vsub.f32 %v101, %v115
    %v117 = vmul.f32 %v116, %v116
    %v118 = vsel %vm62, %v117, 0.0
    %v119 = vrot.slane %v118, 4
    %v120 = vadd.f32 %v118, %v119
    %v121 = vrot.slane %v120, 2
    %v122 = vadd.f32 %v120, %v121
    %v123 = vrot.slane %v122, 1
    %v124 = vadd.f32 %v122, %v123
    %v125 = vmul.f32 %v124, 0.125
    %v126 = vadd.f32 %v125, 1e-05
    %v127 = vrsqrt.pop %v126
    %v128 = vmul.f32 %v106, %v127
    %v129 = vlaneseq
    %v130 = vshrl.u32 %v129, 7
    %v131 = vsub.s32 0, %v130
    %v132 = vrot.slane %v128, %v131
    %v133 = vmul.f32 %v116, %v132
    %v134 = vlaneseq
    %v135 = vshrl.u32 %v134, 7
    %v136 = vsub.s32 0, %v135
    %v137 = vrot.slane %v107, %v136
    %v138 = vadd.f32 %v133, %v137
    %v139 = vmax.f32 %v138, 0.0
    %v140 = vpack.c.bf16 %v139, %v139
    %141 = vrot.lane.b32.xlu0 %v54, 64
    %v142 = vpop.permute.xlu0 %141
    %143 = vrot.lane.b32.xlu0 %v55, 64
    %v144 = vpop.permute.xlu0 %143
    %145 = vrot.lane.b32.xlu0 %v56, 64
    %v146 = vpop.permute.xlu0 %145
    %147 = vrot.lane.b32.xlu0 %v57, 64
    %v148 = vpop.permute.xlu0 %147
    %v154 = vsel %vm62, %v140, 0
    %156 = vmatprep.subr.bf16.mxu0 0
    %157 = vmatpush1.bf16.msra.mxu0 0
    %158 = vmatprep.subr.bf16.mxu0 0
    %159 = vmatpush1.bf16.msra.mxu0 0
    %160 = vmatprep.subr.bf16.mxu0 0
    %161 = vmatpush1.bf16.msra.mxu0 0
    %162 = vmatprep.subr.bf16.mxu0 0
    %163 = vmatpush1.bf16.msra.mxu0 0
    %164 = vmatprep.subr.bf16.mxu0 0
    %165 = vmatpush1.bf16.msra.mxu0 %v148
    %166 = vmatprep.subr.bf16.mxu0 0
    %167 = vmatpush1.bf16.msra.mxu0 %v146
    %168 = vmatprep.subr.bf16.mxu0 0
    %169 = vmatpush1.bf16.msra.mxu0 %v144
    %170 = vmatprep.subr.bf16.mxu0 0
    %171 = vmatpush1.bf16.msra.mxu0 %v142
    %172 = vmatprep.subr.bf16.mxu0 0
    %173 = vmatpush2.bf16.msra.mxu0 0
    %174 = vmatprep.subr.bf16.mxu0 0
    %175 = vmatpush2.bf16.msra.mxu0 0
    %176 = vmatprep.subr.bf16.mxu0 0
    %177 = vmatpush2.bf16.msra.mxu0 0
    %178 = vmatprep.subr.bf16.mxu0 0
    %179 = vmatpush2.bf16.msra.mxu0 0
    %180 = vmatprep.subr.bf16.mxu0 0
    %181 = vmatpush2.bf16.msra.mxu0 0
    %182 = vmatprep.subr.bf16.mxu0 0
    %183 = vmatpush2.bf16.msra.mxu0 0
    %184 = vmatprep.subr.bf16.mxu0 0
    %185 = vmatpush2.bf16.msra.mxu0 0
    %186 = vmatprep.subr.bf16.mxu0 0
    %187 = vmatpush2.bf16.msra.mxu0 0
    %188 = vmatprep.mubr.bf16.mxu0 0
    %189 = vmatmul.mubr.bf16.gmra.mxu0 %v154
    %v190 = vpop.f32.mrf.mxu0
    %v191 = vadd.f32 0.0, %v190
    %v192 = vpop.f32.mrf.mxu0
    %v193 = vpop.f32.mrf.mxu0
    %v194 = vpop.f32.mrf.mxu0
    %195 = vdwg.mxu0
    %v196 = vld [vmem:[%s2 + $0x2] sm:$0x1]
    %v197 = vld [vmem:[%s2 + $0x3] sm:$0x1]
    %vm198 = vcmask 261120
    %v199 = vsel %vm198, %v191, 0.0
    %v200 = vrot.slane %v199, 4
    %v201 = vadd.f32 %v199, %v200
    %v202 = vrot.slane %v201, 2
    %v203 = vadd.f32 %v201, %v202
    %v204 = vrot.slane %v203, 1
    %v205 = vadd.f32 %v203, %v204
    %v206 = vmul.f32 %v205, 0.125
    %v207 = vsub.f32 %v191, %v206
    %v208 = vmul.f32 %v207, %v207
    %v209 = vsel %vm198, %v208, 0.0
    %v210 = vrot.slane %v209, 4
    %v211 = vadd.f32 %v209, %v210
    %v212 = vrot.slane %v211, 2
    %v213 = vadd.f32 %v211, %v212
    %v214 = vrot.slane %v213, 1
    %v215 = vadd.f32 %v213, %v214
    %v216 = vmul.f32 %v215, 0.125
    %v217 = vadd.f32 %v216, 1e-05
    %v218 = vrsqrt.pop %v217
    %v219 = vmul.f32 %v196, %v218
    %v220 = vlaneseq
    %v221 = vshrl.u32 %v220, 7
    %v222 = vsub.s32 0, %v221
    %v223 = vrot.slane %v219, %v222
    %v224 = vmul.f32 %v207, %v223
    %v225 = vlaneseq
    %v226 = vshrl.u32 %v225, 7
    %v227 = vsub.s32 0, %v226
    %v228 = vrot.slane %v197, %v227
    %v229 = vadd.f32 %v224, %v228
    %v230 = vmax.f32 %v229, 0.0
    %v231 = vpack.c.bf16 %v230, %v230
    %v232 = vld [vmem:[#allocation2] sm:$0xf]
    %v233 = vld [vmem:[#allocation2 + $0x4] sm:$0xf]
    %v234 = vld [vmem:[#allocation2 + $0x8] sm:$0xf]
    %v235 = vld [vmem:[#allocation2 + $0xc] sm:$0xf]
    %v240 = vunpack.c.l.b16 %v232
    %v241 = vunpack.c.l.b16 %v233
    %v242 = vunpack.c.l.b16 %v234
    %v243 = vunpack.c.l.b16 %v235
    %v244 = vpack.c.b16 %v241, %v240
    %v245 = vpack.c.b16 %v243, %v242
    %246 = vrot.lane.b32.xlu0 %v244, 32
    %v247 = vpop.permute.xlu0 %246
    %248 = vrot.lane.b32.xlu0 %v245, 32
    %v249 = vpop.permute.xlu0 %248
    %v253 = vsel %vm198, %v231, 0
    %255 = vmatprep.subr.bf16.mxu0 0
    %256 = vmatpush1.bf16.msra.mxu0 0
    %257 = vmatprep.subr.bf16.mxu0 0
    %258 = vmatpush1.bf16.msra.mxu0 0
    %259 = vmatprep.subr.bf16.mxu0 0
    %260 = vmatpush1.bf16.msra.mxu0 0
    %261 = vmatprep.subr.bf16.mxu0 0
    %262 = vmatpush1.bf16.msra.mxu0 0
    %263 = vmatprep.subr.bf16.mxu0 0
    %264 = vmatpush1.bf16.msra.mxu0 0
    %265 = vmatprep.subr.bf16.mxu0 0
    %266 = vmatpush1.bf16.msra.mxu0 0
    %267 = vmatprep.subr.bf16.mxu0 0
    %268 = vmatpush1.bf16.msra.mxu0 %v249
    %269 = vmatprep.subr.bf16.mxu0 0
    %270 = vmatpush1.bf16.msra.mxu0 %v247
    %271 = vmatprep.subr.bf16.mxu0 0
    %272 = vmatpush2.bf16.msra.mxu0 0
    %273 = vmatprep.subr.bf16.mxu0 0
    %274 = vmatpush2.bf16.msra.mxu0 0
    %275 = vmatprep.subr.bf16.mxu0 0
    %276 = vmatpush2.bf16.msra.mxu0 0
    %277 = vmatprep.subr.bf16.mxu0 0
    %278 = vmatpush2.bf16.msra.mxu0 0
    %279 = vmatprep.subr.bf16.mxu0 0
    %280 = vmatpush2.bf16.msra.mxu0 0
    %281 = vmatprep.subr.bf16.mxu0 0
    %282 = vmatpush2.bf16.msra.mxu0 0
    %283 = vmatprep.subr.bf16.mxu0 0
    %284 = vmatpush2.bf16.msra.mxu0 0
    %285 = vmatprep.subr.bf16.mxu0 0
    %286 = vmatpush2.bf16.msra.mxu0 0
    %287 = vmatprep.mubr.bf16.mxu0 0
    %288 = vmatmul.mubr.bf16.gmra.mxu0 %v253
    %v289 = vpop.f32.mrf.mxu0
    %v290 = vadd.f32 0.0, %v289
    %v291 = vpop.f32.mrf.mxu0
    %v292 = vpop.f32.mrf.mxu0
    %v293 = vpop.f32.mrf.mxu0
    %294 = vdwg.mxu0
    %v295 = vld [vmem:[%s2 + $0x4] sm:$0x1]
    %v296 = vld [vmem:[%s2 + $0x5] sm:$0x1]
    %vm297 = vcmask 130048
    %v298 = vsel %vm297, %v290, 0.0
    %v299 = vrot.slane %v298, 4
    %v300 = vadd.f32 %v298, %v299
    %v301 = vrot.slane %v300, 2
    %v302 = vadd.f32 %v300, %v301
    %v303 = vrot.slane %v302, 1
    %v304 = vadd.f32 %v302, %v303
    %v305 = vmul.f32 %v304, 0.125
    %v306 = vsub.f32 %v290, %v305
    %v307 = vmul.f32 %v306, %v306
    %v308 = vsel %vm297, %v307, 0.0
    %v309 = vrot.slane %v308, 4
    %v310 = vadd.f32 %v308, %v309
    %v311 = vrot.slane %v310, 2
    %v312 = vadd.f32 %v310, %v311
    %v313 = vrot.slane %v312, 1
    %v314 = vadd.f32 %v312, %v313
    %v315 = vmul.f32 %v314, 0.125
    %v316 = vadd.f32 %v315, 1e-05
    %v317 = vrsqrt.pop %v316
    %v318 = vmul.f32 %v295, %v317
    %v319 = vlaneseq
    %v320 = vshrl.u32 %v319, 7
    %v321 = vsub.s32 0, %v320
    %v322 = vrot.slane %v318, %v321
    %v323 = vmul.f32 %v306, %v322
    %v324 = vlaneseq
    %v325 = vshrl.u32 %v324, 7
    %v326 = vsub.s32 0, %v325
    %v327 = vrot.slane %v296, %v326
    %v328 = vadd.f32 %v323, %v327
    %v329 = vmax.f32 %v328, 0.0
    %v330 = vld [vmem:[%s2 + $0x6] sm:$0x1]
    %v331 = vlaneseq
    %v332 = vshrl.u32 %v331, 7
    %v333 = vsub.s32 0, %v332
    %v334 = vrot.slane %v330, %v333
    %v335 = vmul.f32 %v329, %v334
    %v336 = vsel %vm297, %v335, 0.0
    %337 = vadd.xlane.f32.xlu0 %v336
    %v338 = vpop.xlane.xlu0 %337
    %v339 = vld [vmem:[%s2 + $0x7] sm:$0x1]
    %v340 = vlaneseq
    %v341 = vshrl.u32 %v340, 7
    %v342 = vsub.s32 0, %v341
    %v343 = vrot.slane %v339, %v342
    %v344 = vadd.f32 %v338, %v343
    %vm345 = vcmask 7168
    %346 = vst.msk [vmem:[%s3] sm:$0xff] %vm345, %v344
    // Predicated region
    $region18: #{discriminator_z.1} parent=1 // pred_check
      _
    $region19: #{discriminator_z.1} parent=1 // pred_check_branch
      %348 = sbr.rel (0) target = $region21
    $region20: #{discriminator_z.1} parent=1 // pred_region
      _
    $region21: #{discriminator_z.1} parent=1 // pred_fallthru
      _
    // Predicated region
    $region22: #{discriminator_z.1} parent=1 // pred_check
      _
    $region23: #{discriminator_z.1} parent=1 // pred_check_branch
      %350 = sbr.rel (0) target = $region25
    $region24: #{discriminator_z.1} parent=1 // pred_region
      _
    $region25: #{discriminator_z.1} parent=1 // pred_fallthru
      _
    %351 = vsyncpa [#allocation3], 1

</llo_original>
